<compile_context>
chip_gen: v7x
topology: tpu7x:2x2x1
jax: 0.10.0
libtpu: 0.0.40
codegen_flags: <defaults>
</compile_context>

<pallas_src>
import numpy as np
import jax
import jax.numpy as jnp
from jax.experimental import pallas as pl
from jax.experimental.pallas import tpu as pltpu

EPS_BN = 1e-5   # nn.BatchNorm2d default eps
N_TAPS = 4      # 2x2 depthwise conv -> 4 taps


# ---------------------------------------------------------------------------
# Kernel 1: adaptive avg-pool (rs x rs) + depthwise Conv2d(k=2, s=2, groups=C).
# x rows are (batch, channel) pairs; streamed over row tiles ("parallel" grid).
# ---------------------------------------------------------------------------
def pool_conv_kernel(x_ref, p_ref, w_ref, conv_ref):
    x = x_ref[...]                                              # (TR, HW)
    acc = jnp.zeros(conv_ref.shape, jnp.float32)                # (TR, 16)
    for t in range(N_TAPS):                                     # static unroll (4)
        taps = jnp.dot(x, p_ref[t],                             # shared pool/tap matrix
                       preferred_element_type=jnp.float32)      # (TR, 16)
        acc = acc + taps * w_ref[t]                             # (TR, 1) lane-broadcast
    conv_ref[...] = acc


# ---------------------------------------------------------------------------
# Kernel 2: BatchNorm2d (training-mode batch stats) + ReLU6 + Linear1 + ReLU6
#           + Linear2 + Sigmoid  ->  per-(sample, channel) gate.
# Operates on the tiny (B, C*16) pooled/conv intermediate; single grid step.
# ---------------------------------------------------------------------------
def gate_kernel(conv_ref, gamma_ref, beta_ref, avg_ref, exp_ref,
                w1_ref, b1_ref, w2_ref, b2_ref, gate_ref):
    conv = conv_ref[...]                                        # (B, C*16)
    # per-column mean / mean-of-squares over the batch (VPU reduction) ...
    mean_col = jnp.mean(conv, axis=0, keepdims=True)            # (1, C*16)
    msq_col = jnp.mean(conv * conv, axis=0, keepdims=True)      # (1, C*16)
    # ... then group the 16 spatial columns per channel with a skinny constant matrix.
    ch_mean = jnp.dot(mean_col, avg_ref[...], preferred_element_type=jnp.float32)  # (1, C)
    ch_msq = jnp.dot(msq_col, avg_ref[...], preferred_element_type=jnp.float32)    # (1, C)
    var = jnp.maximum(ch_msq - ch_mean * ch_mean, 0.0)          # biased var, clamped >= 0
    inv_std = jax.lax.rsqrt(var + EPS_BN)
    scale_c = gamma_ref[...] * inv_std                          # (1, C)
    shift_c = beta_ref[...] - ch_mean * scale_c                 # (1, C)
    # broadcast the per-channel affine back across the 16 lanes of each channel
    scale = jnp.dot(scale_c, exp_ref[...], preferred_element_type=jnp.float32)  # (1, C*16)
    shift = jnp.dot(shift_c, exp_ref[...], preferred_element_type=jnp.float32)  # (1, C*16)
    y = jnp.clip(conv * scale + shift, 0.0, 6.0)                # BN + ReLU6
    h1 = jnp.dot(y, w1_ref[...], preferred_element_type=jnp.float32) + b1_ref[...]
    h1 = jnp.clip(h1, 0.0, 6.0)                                 # ReLU6
    h2 = jnp.dot(h1, w2_ref[...], preferred_element_type=jnp.float32) + b2_ref[...]
    gate_ref[...] = jax.nn.sigmoid(h2)                          # (B, C)


# ---------------------------------------------------------------------------
# Kernel 3: out = identity * gate  (gate broadcast over the H*W lanes per row).
# ---------------------------------------------------------------------------
def scale_kernel(x_ref, g_ref, o_ref):
    o_ref[...] = x_ref[...] * g_ref[...]                        # (TR, HW) * (TR, 1)


def _pick_batch_tile(B, C, HW, target_bytes=2 << 20):
    """Largest divisor TB of B with (TB*C) % 8 == 0 (or TB == B) and tile <= target."""
    cap = max(1, target_bytes // (C * HW * 4))
    for tb in range(min(B, cap), 0, -1):
        if B % tb == 0 and ((tb * C) % 8 == 0 or tb == B):
            return tb
    return B


def se_block_v3_pallas(x, w_conv, bn_gamma, bn_beta, w1, b1, w2, b2,
                       reduction_s=8, batch_tile=None):
    B, C, H, W = x.shape
    HW = H * W
    rs = reduction_s
    # AdaptiveAvgPool2d(rs) reduces to uniform windows only when H, W are multiples of rs.
    assert H % rs == 0 and W % rs == 0, "H, W must be multiples of reduction_s"
    so = rs // 2                    # conv output spatial size per side
    n_out = so * so                 # features per channel after the conv (16 for rs=8)
    hb, wb = H // rs, W // rs

    TB = batch_tile if batch_tile is not None else _pick_batch_tile(B, C, HW)
    assert B % TB == 0
    TR = TB * C                     # (batch, channel) rows per tile
    assert (TR % 8 == 0) or (TB == B)
    n_tiles = B // TB

    # ---- host-side structural constants (tiny, numpy, built once) ----
    # P[t]: (HW, n_out) shared pooling matrix for conv tap t = 2p+q: entry 1/(hb*wb)
    # where input pixel (hi, wi) lies in the pooling window feeding pooled location
    # (2i+p, 2j+q) of conv output (i, j).
    P = np.zeros((N_TAPS, HW, n_out), np.float32)
    inv_win = 1.0 / (hb * wb)
    for t in range(N_TAPS):
        p, q = t // 2, t % 2
        for i in range(so):
            for j in range(so):
                a, b_ = 2 * i + p, 2 * j + q
                for hi in range(a * hb, (a + 1) * hb):
                    for wi in range(b_ * wb, (b_ + 1) * wb):
                        P[t, hi * W + wi, i * so + j] = inv_win

    # Skinny grouping / broadcast matrices for BatchNorm channel statistics.
    A = np.zeros((C * n_out, C), np.float32)     # mean over the n_out cols of a channel
    E = np.zeros((C, C * n_out), np.float32)     # channel -> n_out-lane broadcast
    for c in range(C):
        A[c * n_out:(c + 1) * n_out, c] = 1.0 / n_out
        E[c, c * n_out:(c + 1) * n_out] = 1.0

    # Per-row conv-tap weights; the channel pattern repeats every C rows, so one tile's
    # worth (TR rows) is reused by every grid step (resident BlockSpec).
    w_flat = w_conv[:, 0].reshape(C, N_TAPS).astype(jnp.float32)   # [c, 2p+q]
    w_taps = jnp.tile(w_flat, (TB, 1)).T[:, :, None]               # (4, TR, 1)

    x2 = x.reshape(B * C, HW).astype(jnp.float32)                  # lane-dense rows

    # ---- kernel 1: pool + depthwise conv, streamed over (batch, channel) rows ----
    # TODO(synk): for very large H*W the shared P matrices should also be tiled along HW.
    conv = pl.pallas_call(
        pool_conv_kernel,
        out_shape=jax.ShapeDtypeStruct((B * C, n_out), jnp.float32),
        grid=(n_tiles,),
        in_specs=[
            pl.BlockSpec((TR, HW), lambda i: (i, 0)),
            pl.BlockSpec((N_TAPS, HW, n_out), lambda i: (0, 0, 0)),
            pl.BlockSpec((N_TAPS, TR, 1), lambda i: (0, 0, 0)),
        ],
        out_specs=pl.BlockSpec((TR, n_out), lambda i: (i, 0)),
        compiler_params=pltpu.CompilerParams(
            dimension_semantics=("parallel",),
            vmem_limit_bytes=32 * 1024 * 1024),
        cost_estimate=pl.CostEstimate(
            flops=2 * B * C * HW * n_out * N_TAPS,
            transcendentals=0,
            bytes_accessed=4 * (B * C * HW + B * C * n_out
                                + N_TAPS * HW * n_out + N_TAPS * TR)),
    )(x2, jnp.asarray(P), w_taps)

    # (B*C, 16) -> (B, C*16): matches PyTorch's x.reshape(B, -1) flatten order.
    conv_flat = conv.reshape(B, C * n_out)

    hidden = w1.shape[1]
    gate_args = (conv_flat,
                 bn_gamma.astype(jnp.float32)[None, :],
                 bn_beta.astype(jnp.float32)[None, :],
                 jnp.asarray(A), jnp.asarray(E),
                 w1.astype(jnp.float32), b1.astype(jnp.float32)[None, :],
                 w2.astype(jnp.float32), b2.astype(jnp.float32)[None, :])

    # ---- kernel 2: BN (batch stats) + ReLU6 + MLP + Sigmoid -> gate (B, C) ----
    gate = pl.pallas_call(
        gate_kernel,
        out_shape=jax.ShapeDtypeStruct((B, C), jnp.float32),
        grid=(1,),
        in_specs=[pl.BlockSpec(a.shape, lambda i: (0, 0)) for a in gate_args],
        out_specs=pl.BlockSpec((B, C), lambda i: (0, 0)),
        compiler_params=pltpu.CompilerParams(dimension_semantics=("arbitrary",)),
        cost_estimate=pl.CostEstimate(
            flops=2 * B * C * n_out * (hidden + 1) + 2 * B * hidden * C
                  + 10 * B * C * n_out,
            transcendentals=B * C,
            bytes_accessed=4 * (B * C * n_out + B * C + C * n_out * (hidden + 2 * C)
                                + hidden * C + 2 * C + hidden)),
    )(*gate_args)

    # ---- kernel 3: out = identity * gate (broadcast over spatial lanes) ----
    gate_rows = gate.reshape(B * C, 1)
    out2 = pl.pallas_call(
        scale_kernel,
        out_shape=jax.ShapeDtypeStruct((B * C, HW), jnp.float32),
        grid=(n_tiles,),
        in_specs=[
            pl.BlockSpec((TR, HW), lambda i: (i, 0)),
            pl.BlockSpec((TR, 1), lambda i: (i, 0)),
        ],
        out_specs=pl.BlockSpec((TR, HW), lambda i: (i, 0)),
        compiler_params=pltpu.CompilerParams(
            dimension_semantics=("parallel",),
            vmem_limit_bytes=32 * 1024 * 1024),
        cost_estimate=pl.CostEstimate(
            flops=B * C * HW,
            transcendentals=0,
            bytes_accessed=4 * (2 * B * C * HW + B * C)),
    )(x2, gate_rows)

    return out2.reshape(B, C, H, W)


def se_block_v3_reference(x, w_conv, bn_gamma, bn_beta, w1, b1, w2, b2,
                          reduction_s=8):
    """Pure-JAX reference mirroring the PyTorch forward (training-mode BatchNorm)."""
    B, C, H, W = x.shape
    rs = reduction_s
    p = x.reshape(B, C, rs, H // rs, rs, W // rs).mean(axis=(3, 5))       # adaptive pool
    pr = p.reshape(B, C, rs // 2, 2, rs // 2, 2)
    conv = jnp.einsum('bcipjq,cpq->bcij', pr, w_conv[:, 0])               # depthwise conv
    mean = conv.mean(axis=(0, 2, 3), keepdims=True)
    var = ((conv - mean) ** 2).mean(axis=(0, 2, 3), keepdims=True)
    y = (conv - mean) / jnp.sqrt(var + EPS_BN)
    y = y * bn_gamma[None, :, None, None] + bn_beta[None, :, None, None]
    y = jnp.clip(y, 0.0, 6.0)                                             # ReLU6
    y = y.reshape(B, -1)
    h1 = jnp.clip(y @ w1 + b1, 0.0, 6.0)
    h2 = h1 @ w2 + b2
    gate = jax.nn.sigmoid(h2)
    return x * gate[:, :, None, None]


if __name__ == "__main__":
    B, C, H, W = 8, 4, 16, 16
    reduction_c, reduction_s = 2, 8
    hidden = C // reduction_c
    in_feat = C * (reduction_s // 2) * (reduction_s // 2)

    key = jax.random.PRNGKey(0)
    kx, kc, k1, kb1, k2, kb2 = jax.random.split(key, 6)
    x = jax.random.normal(kx, (B, C, H, W), jnp.float32)
    # deterministic synthetic parameters (shapes from SE_BlockV3.__init__)
    w_conv = jax.random.normal(kc, (C, 1, 2, 2), jnp.float32) * 0.5   # depthwise conv weight
    bn_gamma = jnp.ones((C,), jnp.float32)                            # BatchNorm2d affine init
    bn_beta = jnp.zeros((C,), jnp.float32)
    w1 = jax.random.normal(k1, (in_feat, hidden), jnp.float32) * 0.1  # linear1 (in, out)
    b1 = jax.random.normal(kb1, (hidden,), jnp.float32) * 0.1
    w2 = jax.random.normal(k2, (hidden, C), jnp.float32) * 0.1        # linear2 (in, out)
    b2 = jax.random.normal(kb2, (C,), jnp.float32) * 0.1

    # batch_tile=2 -> grid=(4,) on the streaming kernels, exercising batch tiling
    # while BatchNorm statistics are still taken over the full batch.
    out = se_block_v3_pallas(x, w_conv, bn_gamma, bn_beta, w1, b1, w2, b2,
                             reduction_s=reduction_s, batch_tile=2)
    out = jax.block_until_ready(out)

    with jax.default_matmul_precision('highest'):
        ref = se_block_v3_reference(x, w_conv, bn_gamma, bn_beta, w1, b1, w2, b2,
                                    reduction_s=reduction_s)
    ref = jax.block_until_ready(ref)

    assert out.shape == (B, C, H, W)
    if not np.allclose(np.asarray(out), np.asarray(ref), rtol=2e-2, atol=2e-2):
        raise AssertionError("Pallas kernel output does not match JAX reference")
    print("KERNEL_OK")
</pallas_src>

<mosaic_0001>
module attributes {stable_mosaic.version = 11 : i64} {
  func.func @pool_conv_kernel(%arg0: i32, %arg1: memref<8x256xf32, #tpu.memory_space<vmem>>, %arg2: memref<4x256x16xf32, #tpu.memory_space<vmem>>, %arg3: memref<4x8x1xf32, #tpu.memory_space<vmem>>, %arg4: memref<8x16xf32, #tpu.memory_space<vmem>>) attributes {dimension_semantics = [#tpu.dimension_semantics<parallel>], iteration_bounds = array<i64: 4>, scalar_prefetch = 0 : i64, scratch_operands = 0 : i64, tpu.core_type = #tpu.core_type<tc>, window_params = [{transform_indices = @transform_0, window_bounds = array<i64: 8, 256>}, {pipeline_mode = #tpu.pipeline_mode<synchronous>, transform_indices = @transform_1, window_bounds = array<i64: 4, 256, 16>}, {pipeline_mode = #tpu.pipeline_mode<synchronous>, transform_indices = @transform_2, window_bounds = array<i64: 4, 8, 1>}, {transform_indices = @transform_3, window_bounds = array<i64: 8, 16>}]} {
    %c0 = arith.constant 0 : index
    %c0_0 = arith.constant 0 : index
    %0 = vector.load %arg1[%c0, %c0_0] : memref<8x256xf32, #tpu.memory_space<vmem>>, vector<8x256xf32>
    %cst = arith.constant 0.000000e+00 : f32
    %1 = vector.broadcast %cst : f32 to vector<8x16xf32>
    %c0_1 = arith.constant 0 : index
    %c0_2 = arith.constant 0 : index
    %c0_3 = arith.constant 0 : index
    %2 = vector.load %arg2[%c0_1, %c0_2, %c0_3] : memref<4x256x16xf32, #tpu.memory_space<vmem>>, vector<1x256x16xf32>
    %3 = vector.shape_cast %2 : vector<1x256x16xf32> to vector<256x16xf32>
    %cst_4 = arith.constant dense<0.000000e+00> : vector<8x16xf32>
    %4 = tpu.matmul %0, %3, %cst_4 {dimension_numbers = #tpu.dot_dimension_numbers<[1], [0], [0], [1], [0, 0, 1, 1], [], []>} : vector<8x256xf32>, vector<256x16xf32>, vector<8x16xf32> -> vector<8x16xf32>
    %c0_5 = arith.constant 0 : index
    %c0_6 = arith.constant 0 : index
    %c0_7 = arith.constant 0 : index
    %5 = vector.load %arg3[%c0_5, %c0_6, %c0_7] : memref<4x8x1xf32, #tpu.memory_space<vmem>>, vector<1x8x1xf32>
    %6 = vector.shape_cast %5 : vector<1x8x1xf32> to vector<8x1xf32>
    %7 = vector.broadcast %6 : vector<8x1xf32> to vector<8x16xf32>
    %8 = arith.mulf %4, %7 : vector<8x16xf32>
    %9 = arith.addf %1, %8 : vector<8x16xf32>
    %c1 = arith.constant 1 : index
    %c0_8 = arith.constant 0 : index
    %c0_9 = arith.constant 0 : index
    %10 = vector.load %arg2[%c1, %c0_8, %c0_9] : memref<4x256x16xf32, #tpu.memory_space<vmem>>, vector<1x256x16xf32>
    %11 = vector.shape_cast %10 : vector<1x256x16xf32> to vector<256x16xf32>
    %cst_10 = arith.constant dense<0.000000e+00> : vector<8x16xf32>
    %12 = tpu.matmul %0, %11, %cst_10 {dimension_numbers = #tpu.dot_dimension_numbers<[1], [0], [0], [1], [0, 0, 1, 1], [], []>} : vector<8x256xf32>, vector<256x16xf32>, vector<8x16xf32> -> vector<8x16xf32>
    %c1_11 = arith.constant 1 : index
    %c0_12 = arith.constant 0 : index
    %c0_13 = arith.constant 0 : index
    %13 = vector.load %arg3[%c1_11, %c0_12, %c0_13] : memref<4x8x1xf32, #tpu.memory_space<vmem>>, vector<1x8x1xf32>
    %14 = vector.shape_cast %13 : vector<1x8x1xf32> to vector<8x1xf32>
    %15 = vector.broadcast %14 : vector<8x1xf32> to vector<8x16xf32>
    %16 = arith.mulf %12, %15 : vector<8x16xf32>
    %17 = arith.addf %9, %16 : vector<8x16xf32>
    %c2 = arith.constant 2 : index
    %c0_14 = arith.constant 0 : index
    %c0_15 = arith.constant 0 : index
    %18 = vector.load %arg2[%c2, %c0_14, %c0_15] : memref<4x256x16xf32, #tpu.memory_space<vmem>>, vector<1x256x16xf32>
    %19 = vector.shape_cast %18 : vector<1x256x16xf32> to vector<256x16xf32>
    %cst_16 = arith.constant dense<0.000000e+00> : vector<8x16xf32>
    %20 = tpu.matmul %0, %19, %cst_16 {dimension_numbers = #tpu.dot_dimension_numbers<[1], [0], [0], [1], [0, 0, 1, 1], [], []>} : vector<8x256xf32>, vector<256x16xf32>, vector<8x16xf32> -> vector<8x16xf32>
    %c2_17 = arith.constant 2 : index
    %c0_18 = arith.constant 0 : index
    %c0_19 = arith.constant 0 : index
    %21 = vector.load %arg3[%c2_17, %c0_18, %c0_19] : memref<4x8x1xf32, #tpu.memory_space<vmem>>, vector<1x8x1xf32>
    %22 = vector.shape_cast %21 : vector<1x8x1xf32> to vector<8x1xf32>
    %23 = vector.broadcast %22 : vector<8x1xf32> to vector<8x16xf32>
    %24 = arith.mulf %20, %23 : vector<8x16xf32>
    %25 = arith.addf %17, %24 : vector<8x16xf32>
    %c3 = arith.constant 3 : index
    %c0_20 = arith.constant 0 : index
    %c0_21 = arith.constant 0 : index
    %26 = vector.load %arg2[%c3, %c0_20, %c0_21] : memref<4x256x16xf32, #tpu.memory_space<vmem>>, vector<1x256x16xf32>
    %27 = vector.shape_cast %26 : vector<1x256x16xf32> to vector<256x16xf32>
    %cst_22 = arith.constant dense<0.000000e+00> : vector<8x16xf32>
    %28 = tpu.matmul %0, %27, %cst_22 {dimension_numbers = #tpu.dot_dimension_numbers<[1], [0], [0], [1], [0, 0, 1, 1], [], []>} : vector<8x256xf32>, vector<256x16xf32>, vector<8x16xf32> -> vector<8x16xf32>
    %c3_23 = arith.constant 3 : index
    %c0_24 = arith.constant 0 : index
    %c0_25 = arith.constant 0 : index
    %29 = vector.load %arg3[%c3_23, %c0_24, %c0_25] : memref<4x8x1xf32, #tpu.memory_space<vmem>>, vector<1x8x1xf32>
    %30 = vector.shape_cast %29 : vector<1x8x1xf32> to vector<8x1xf32>
    %31 = vector.broadcast %30 : vector<8x1xf32> to vector<8x16xf32>
    %32 = arith.mulf %28, %31 : vector<8x16xf32>
    %33 = arith.addf %25, %32 : vector<8x16xf32>
    %c0_26 = arith.constant 0 : index
    %c0_27 = arith.constant 0 : index
    %34 = vector.load %arg4[%c0_26, %c0_27] : memref<8x16xf32, #tpu.memory_space<vmem>>, vector<8x16xf32>
    tpu.vector_store %arg4[%c0_26, %c0_27], %33 {strides = array<i32>} : memref<8x16xf32, #tpu.memory_space<vmem>>, vector<8x16xf32>,
    return
  }
  func.func @transform_0(%arg0: i32) -> (i32, i32) {
    %c0_i32 = arith.constant 0 : i32
    %c0_i32_0 = arith.constant 0 : i32
    return %arg0, %c0_i32 : i32, i32
  }
  func.func @transform_1(%arg0: i32) -> (i32, i32, i32) {
    %c0_i32 = arith.constant 0 : i32
    %c0_i32_0 = arith.constant 0 : i32
    %c0_i32_1 = arith.constant 0 : i32
    %c0_i32_2 = arith.constant 0 : i32
    return %c0_i32, %c0_i32_0, %c0_i32_1 : i32, i32, i32
  }
  func.func @transform_2(%arg0: i32) -> (i32, i32, i32) {
    %c0_i32 = arith.constant 0 : i32
    %c0_i32_0 = arith.constant 0 : i32
    %c0_i32_1 = arith.constant 0 : i32
    %c0_i32_2 = arith.constant 0 : i32
    return %c0_i32, %c0_i32_0, %c0_i32_1 : i32, i32, i32
  }
  func.func @transform_3(%arg0: i32) -> (i32, i32) {
    %c0_i32 = arith.constant 0 : i32
    %c0_i32_0 = arith.constant 0 : i32
    return %arg0, %c0_i32 : i32, i32
  }
}

</mosaic_0001>

<llo_original>
// kernel: tpu_custom_call.1
$region0: #{tpu_custom_call.1}
  #allocation0 [shape = 'u32[]', space=smem, size = 0x4, offset = 0x4, fixed_abs, tag = 'smem constant byte address 0x4 - core index']
  #allocation1 [shape = 'u32[144,128]{1,0:T(1,128)}', space=vmem, size = 0x12000, scoped, tag = 'internal scratch']
  %s0 = inlined_call_operand.vmem [shape: f32[32,256], index: 0, kind: input, shape index: {}]
  %s1 = inlined_call_operand.vmem [shape: f32[4,256,16], index: 1, kind: input, shape index: {}]
  %s2 = inlined_call_operand.vmem [shape: f32[4,8,1], index: 2, kind: input, shape index: {}]
  %s3 = inlined_call_operand.vmem [shape: f32[32,16], index: 3, kind: output, shape index: {}]
  %s4 = sld [smem:[#allocation0]]
  $region45: #{tpu_custom_call.1} parent=0
    _
  %s6 = ssub.s32 1, %s4
  %s7 = scalar_select 0, %s6, %s4
  loop: start=0, step=1, limit=6
  $region2: #{tpu_custom_call.1} parent=0 // loop_pre_header
    _
  $region3: #{tpu_custom_call.1} parent=0 // loop_header
    %s9 = sphi 0, %s13
    %p10 = scmp.ge.s32.totalorder %s9, 6
    %s19 = sphi 0, %s21
    %s22 = sphi 0, %s19
    %s23 = sphi 0, %s22
    %s39 = sphi 0, %s23
    %s43 = sphi 0, %s43
    %s45 = sphi 0, %s43
    %s46 = sphi 0, %s45
    %s60 = sphi 0, %s46
    %s64 = sphi 0, %s64
    %s66 = sphi 0, %s64
    %s67 = sphi 0, %s66
    %s81 = sphi 0, %s67
    %s87 = sphi 0, %s89
    %s90 = sphi 0, %s87
    %s91 = sphi 0, %s90
    %s107 = sphi 0, %s91
  $region4: #{tpu_custom_call.1} parent=0 // loop_header_branch
    %12 = sbr.rel (%p10) target = $region8
  $region5: #{tpu_custom_call.1} parent=0 // loop_body
    %s14 = ssub.s32 %s9, 1
    %s15 = ssub.s32 %s9, 2
    %s16 = sadd.s32 %s9, 1
    %s17 = ssub.s32 %s9, %s16
    %p18 = scmp.eq.s32.totalorder %s17, 0
    %s20 = sadd.s32 %s19, 1
    %s21 = scalar_select %p18, %s19, %s20
    %p24 = pneg %p18
    %p25 = scmp.eq.s32.totalorder %s9, 3
    %p26 = por %p24, %p25
    %p27 = scmp.ne.s32.totalorder %s19, %s22
    %p28 = scmp.eq.s32.totalorder %s9, 0
    %p29 = por %p27, %p28
    %p30 = scmp.ne.s32.totalorder %s19, %s22
    %p31 = scmp.eq.s32.totalorder %s14, 3
    %p32 = por %p30, %p31
    %p33 = scmp.ne.s32.totalorder %s22, %s23
    %p34 = scmp.eq.s32.totalorder %s14, 0
    %p35 = por %p33, %p34
    %p36 = scmp.ne.s32.totalorder %s22, %s23
    %p37 = scmp.eq.s32.totalorder %s15, 3
    %p38 = por %p36, %p37
    %p40 = scmp.ne.s32.totalorder %s23, %s39
    %p41 = scmp.eq.s32.totalorder %s15, 0
    %p42 = por %p40, %p41
    %s44 = sadd.s32 %s43, 1
    %p47 = scmp.eq.s32.totalorder %s9, 3
    %p48 = scmp.ne.s32.totalorder %s43, %s45
    %p49 = scmp.eq.s32.totalorder %s9, 0
    %p50 = por %p48, %p49
    %p51 = scmp.ne.s32.totalorder %s43, %s45
    %p52 = scmp.eq.s32.totalorder %s14, 3
    %p53 = por %p51, %p52
    %p54 = scmp.ne.s32.totalorder %s45, %s46
    %p55 = scmp.eq.s32.totalorder %s14, 0
    %p56 = por %p54, %p55
    %p57 = scmp.ne.s32.totalorder %s45, %s46
    %p58 = scmp.eq.s32.totalorder %s15, 3
    %p59 = por %p57, %p58
    %p61 = scmp.ne.s32.totalorder %s46, %s60
    %p62 = scmp.eq.s32.totalorder %s15, 0
    %p63 = por %p61, %p62
    %s65 = sadd.s32 %s64, 1
    %p68 = scmp.eq.s32.totalorder %s9, 3
    %p69 = scmp.ne.s32.totalorder %s64, %s66
    %p70 = scmp.eq.s32.totalorder %s9, 0
    %p71 = por %p69, %p70
    %p72 = scmp.ne.s32.totalorder %s64, %s66
    %p73 = scmp.eq.s32.totalorder %s14, 3
    %p74 = por %p72, %p73
    %p75 = scmp.ne.s32.totalorder %s66, %s67
    %p76 = scmp.eq.s32.totalorder %s14, 0
    %p77 = por %p75, %p76
    %p78 = scmp.ne.s32.totalorder %s66, %s67
    %p79 = scmp.eq.s32.totalorder %s15, 3
    %p80 = por %p78, %p79
    %p82 = scmp.ne.s32.totalorder %s67, %s81
    %p83 = scmp.eq.s32.totalorder %s15, 0
    %p84 = por %p82, %p83
    %s85 = ssub.s32 %s9, %s16
    %p86 = scmp.eq.s32.totalorder %s85, 0
    %s88 = sadd.s32 %s87, 1
    %s89 = scalar_select %p86, %s87, %s88
    %p92 = pneg %p86
    %p93 = scmp.eq.s32.totalorder %s9, 3
    %p94 = por %p92, %p93
    %p95 = scmp.ne.s32.totalorder %s87, %s90
    %p96 = scmp.eq.s32.totalorder %s9, 0
    %p97 = por %p95, %p96
    %p98 = scmp.ne.s32.totalorder %s87, %s90
    %p99 = scmp.eq.s32.totalorder %s14, 3
    %p100 = por %p98, %p99
    %p101 = scmp.ne.s32.totalorder %s90, %s91
    %p102 = scmp.eq.s32.totalorder %s14, 0
    %p103 = por %p101, %p102
    %p104 = scmp.ne.s32.totalorder %s90, %s91
    %p105 = scmp.eq.s32.totalorder %s15, 3
    %p106 = por %p104, %p105
    %p108 = scmp.ne.s32.totalorder %s91, %s107
    %p109 = scmp.eq.s32.totalorder %s15, 0
    %p110 = por %p108, %p109
    %p111 = scmp.le.s32.totalorder 1, %s9
    %p112 = scmp.lt.s32.totalorder %s9, 5
    %p113 = pnand %p111, %p112
    %p114 = pneg %p113
    // Predicated region
    $region9: #{tpu_custom_call.1} parent=5 // pred_check
      _
    $region10: #{tpu_custom_call.1} parent=5 // pred_check_branch
      %116 = sbr.rel (%p113) target = $region12
    $region11: #{tpu_custom_call.1} parent=5 // pred_region
      %s117 = ssub.s32 %s9, 1
      // Predicated region
      $region13: #{tpu_custom_call.1} parent=11 // pred_check
        %p118 = pneg %p56
      $region14: #{tpu_custom_call.1} parent=11 // pred_check_branch
        %120 = sbr.rel (%p118) target = $region16
      $region15: #{tpu_custom_call.1} parent=11 // pred_region
        _
      $region16: #{tpu_custom_call.1} parent=11 // pred_fallthru
        _
      // Predicated region
      $region17: #{tpu_custom_call.1} parent=11 // pred_check
        %p121 = pneg %p77
      $region18: #{tpu_custom_call.1} parent=11 // pred_check_branch
        %123 = sbr.rel (%p121) target = $region20
      $region19: #{tpu_custom_call.1} parent=11 // pred_region
        _
      $region20: #{tpu_custom_call.1} parent=11 // pred_fallthru
        _
    $region12: #{tpu_custom_call.1} parent=5 // pred_fallthru
      _
    %p124 = scmp.lt.s32.totalorder %s9, 4
    // Predicated region
    $region21: #{tpu_custom_call.1} parent=5 // pred_check
      %p125 = pneg %p124
    $region22: #{tpu_custom_call.1} parent=5 // pred_check_branch
      %127 = sbr.rel (%p125) target = $region24
    $region23: #{tpu_custom_call.1} parent=5 // pred_region
      // Predicated region
      $region25: #{tpu_custom_call.1} parent=23 // pred_check
        %p128 = pneg %p29
      $region26: #{tpu_custom_call.1} parent=23 // pred_check_branch
        %130 = sbr.rel (%p128) target = $region28
      $region27: #{tpu_custom_call.1} parent=23 // pred_region
        %p131 = scmp.lt.s32.totalorder %s9, 3
        %s132 = scalar_select %p131, %s9, 3
        %s133 = smul.addr %s132, 2
        %s134 = smul.addr %s133, 8
        %s135 = scalar_lea.vmem %s0, %s134
      $region28: #{tpu_custom_call.1} parent=23 // pred_fallthru
        _
    $region24: #{tpu_custom_call.1} parent=5 // pred_fallthru
      _
    %p136 = scmp.le.s32.totalorder 1, %s9
    %p137 = scmp.lt.s32.totalorder %s9, 5
    %p138 = pnand %p136, %p137
    %p139 = pneg %p138
    // Predicated region
    $region29: #{tpu_custom_call.1} parent=5 // pred_check
      _
    $region30: #{tpu_custom_call.1} parent=5 // pred_check_branch
      %141 = sbr.rel (%p138) target = $region32
    $region31: #{tpu_custom_call.1} parent=5 // pred_region
      %s142 = ssub.s32 %s9, 1
      %p143 = scmp.lt.s32.totalorder %s14, 3
      %s144 = scalar_select %p143, %s14, 3
      %s145 = smul.addr %s144, 2
      %s146 = smul.addr %s145, 8
      %s147 = scalar_lea.vmem %s0, %s146
      %p148 = pneg %p35
      %p149 = pneg %p32
      %p150 = pneg %p56
      %p151 = pneg %p53
      %p152 = pneg %p77
      %p153 = pneg %p74
      %p154 = pneg %p103
      %p155 = pneg %p100
      %p156 = scmp.lt.s32.totalorder %s14, 3
      %s157 = scalar_select %p156, %s14, 3
      %s158 = smul.addr %s157, 8
      %s159 = scalar_lea.vmem %s3, %s158
      %p160 = scmp.lt.s32.totalorder %s14, 3
      %s161 = scalar_select %p160, %s14, 3
      %s162 = smul.addr %s161, 2
      %s163 = smul.addr %s162, 8
      %s164 = scalar_lea.vmem %s0, %s163
      %p165 = scmp.lt.s32.totalorder %s14, 3
      %s166 = scalar_select %p165, %s14, 3
      %s167 = smul.addr %s166, 8
      %s168 = scalar_lea.vmem %s3, %s167
      %v169 = vld [vmem:[%s164] sm:$0xff]
      %v170 = vld [vmem:[%s164 + $0x8] sm:$0xff]
      %v171 = vld [vmem:[%s1] sm:$0xff]
      %v172 = vld [vmem:[%s1 + $0x8] sm:$0xff]
      %v173 = vld [vmem:[%s1 + $0x10] sm:$0xff]
      %v174 = vld [vmem:[%s1 + $0x18] sm:$0xff]
      %v175 = vld [vmem:[%s1 + $0x20] sm:$0xff]
      %v176 = vld [vmem:[%s1 + $0x28] sm:$0xff]
      %v177 = vld [vmem:[%s1 + $0x30] sm:$0xff]
      %v178 = vld [vmem:[%s1 + $0x38] sm:$0xff]
      %v179 = vld [vmem:[%s1 + $0x40] sm:$0xff]
      %v180 = vld [vmem:[%s1 + $0x48] sm:$0xff]
      %v181 = vld [vmem:[%s1 + $0x50] sm:$0xff]
      %v182 = vld [vmem:[%s1 + $0x58] sm:$0xff]
      %v183 = vld [vmem:[%s1 + $0x60] sm:$0xff]
      %v184 = vld [vmem:[%s1 + $0x68] sm:$0xff]
      %v185 = vld [vmem:[%s1 + $0x70] sm:$0xff]
      %v186 = vld [vmem:[%s1 + $0x78] sm:$0xff]
      %v187 = vld [vmem:[%s1 + $0x80] sm:$0xff]
      %v188 = vld [vmem:[%s1 + $0x88] sm:$0xff]
      %v189 = vld [vmem:[%s1 + $0x90] sm:$0xff]
      %v190 = vld [vmem:[%s1 + $0x98] sm:$0xff]
      %v191 = vld [vmem:[%s1 + $0xa0] sm:$0xff]
      %v192 = vld [vmem:[%s1 + $0xa8] sm:$0xff]
      %v193 = vld [vmem:[%s1 + $0xb0] sm:$0xff]
      %v194 = vld [vmem:[%s1 + $0xb8] sm:$0xff]
      %v195 = vld [vmem:[%s1 + $0xc0] sm:$0xff]
      %v196 = vld [vmem:[%s1 + $0xc8] sm:$0xff]
      %v197 = vld [vmem:[%s1 + $0xd0] sm:$0xff]
      %v198 = vld [vmem:[%s1 + $0xd8] sm:$0xff]
      %v199 = vld [vmem:[%s1 + $0xe0] sm:$0xff]
      %v200 = vld [vmem:[%s1 + $0xe8] sm:$0xff]
      %v201 = vld [vmem:[%s1 + $0xf0] sm:$0xff]
      %v202 = vld [vmem:[%s1 + $0xf8] sm:$0xff]
      %203 = vmatprep.subr.mxu0 0.0
      %204 = vmatpush1.msra.mxu0 %v171
      %205 = vmatprep.subr.mxu0 0.0
      %206 = vmatpush1.msra.mxu0 %v172
      %207 = vmatprep.subr.mxu0 0.0
      %208 = vmatpush1.msra.mxu0 %v173
      %209 = vmatprep.subr.mxu0 0.0
      %210 = vmatpush1.msra.mxu0 %v174
      %211 = vmatprep.subr.mxu0 0.0
      %212 = vmatpush1.msra.mxu0 %v175
      %213 = vmatprep.subr.mxu0 0.0
      %214 = vmatpush1.msra.mxu0 %v176
      %215 = vmatprep.subr.mxu0 0.0
      %216 = vmatpush1.msra.mxu0 %v177
      %217 = vmatprep.subr.mxu0 0.0
      %218 = vmatpush1.msra.mxu0 %v178
      %219 = vmatprep.subr.mxu0 0.0
      %220 = vmatpush1.msra.mxu0 %v179
      %221 = vmatprep.subr.mxu0 0.0
      %222 = vmatpush1.msra.mxu0 %v180
      %223 = vmatprep.subr.mxu0 0.0
      %224 = vmatpush1.msra.mxu0 %v181
      %225 = vmatprep.subr.mxu0 0.0
      %226 = vmatpush1.msra.mxu0 %v182
      %227 = vmatprep.subr.mxu0 0.0
      %228 = vmatpush1.msra.mxu0 %v183
      %229 = vmatprep.subr.mxu0 0.0
      %230 = vmatpush1.msra.mxu0 %v184
      %231 = vmatprep.subr.mxu0 0.0
      %232 = vmatpush1.msra.mxu0 %v185
      %233 = vmatprep.subr.mxu0 0.0
      %234 = vmatpush1.msra.mxu0 %v186
      %235 = vmatprep.subr.mxu0 0.0
      %236 = vmatpush1.msra.mxu0 %v187
      %237 = vmatprep.subr.mxu0 0.0
      %238 = vmatpush1.msra.mxu0 %v188
      %239 = vmatprep.subr.mxu0 0.0
      %240 = vmatpush1.msra.mxu0 %v189
      %241 = vmatprep.subr.mxu0 0.0
      %242 = vmatpush1.msra.mxu0 %v190
      %243 = vmatprep.subr.mxu0 0.0
      %244 = vmatpush1.msra.mxu0 %v191
      %245 = vmatprep.subr.mxu0 0.0
      %246 = vmatpush1.msra.mxu0 %v192
      %247 = vmatprep.subr.mxu0 0.0
      %248 = vmatpush1.msra.mxu0 %v193
      %249 = vmatprep.subr.mxu0 0.0
      %250 = vmatpush1.msra.mxu0 %v194
      %251 = vmatprep.subr.mxu0 0.0
      %252 = vmatpush1.msra.mxu0 %v195
      %253 = vmatprep.subr.mxu0 0.0
      %254 = vmatpush1.msra.mxu0 %v196
      %255 = vmatprep.subr.mxu0 0.0
      %256 = vmatpush1.msra.mxu0 %v197
      %257 = vmatprep.subr.mxu0 0.0
      %258 = vmatpush1.msra.mxu0 %v198
      %259 = vmatprep.subr.mxu0 0.0
      %260 = vmatpush1.msra.mxu0 %v199
      %261 = vmatprep.subr.mxu0 0.0
      %262 = vmatpush1.msra.mxu0 %v200
      %263 = vmatprep.subr.mxu0 0.0
      %264 = vmatpush1.msra.mxu0 %v201
      %265 = vmatprep.subr.mxu0 0.0
      %266 = vmatpush1.msra.mxu0 %v202
      %267 = vmatprep.mubr.f32.mxu0 %v170
      %268 = vmatmul.mubr.f32.gmra.mrb[0].mxu0 %v169
      %v269 = vpop.f32.mrb[0].mxu0
      %v270 = vadd.f32 0.0, %v269
      %v271 = vpop.f32.mrb[0].mxu0
      %272 = vdwg.mxu0
      %v273 = vld [vmem:[%s2] sm:$0xff]
      %275 = vset.pattern.permute.xlu0 0
      %276 = vperm.xlu0 %275, %v273
      %v277 = vpop.permute.xlu0 %276
      %v279 = vmul.f32 %v270, %v277
      %v280 = vadd.f32 %v279, 0.0
      %s281 = scalar_lea.vmem %s1, 256
      %v282 = vld [vmem:[%s281] sm:$0xff]
      %v283 = vld [vmem:[%s281 + $0x8] sm:$0xff]
      %v284 = vld [vmem:[%s281 + $0x10] sm:$0xff]
      %v285 = vld [vmem:[%s281 + $0x18] sm:$0xff]
      %v286 = vld [vmem:[%s281 + $0x20] sm:$0xff]
      %v287 = vld [vmem:[%s281 + $0x28] sm:$0xff]
      %v288 = vld [vmem:[%s281 + $0x30] sm:$0xff]
      %v289 = vld [vmem:[%s281 + $0x38] sm:$0xff]
      %v290 = vld [vmem:[%s281 + $0x40] sm:$0xff]
      %v291 = vld [vmem:[%s281 + $0x48] sm:$0xff]
      %v292 = vld [vmem:[%s281 + $0x50] sm:$0xff]
      %v293 = vld [vmem:[%s281 + $0x58] sm:$0xff]
      %v294 = vld [vmem:[%s281 + $0x60] sm:$0xff]
      %v295 = vld [vmem:[%s281 + $0x68] sm:$0xff]
      %v296 = vld [vmem:[%s281 + $0x70] sm:$0xff]
      %v297 = vld [vmem:[%s281 + $0x78] sm:$0xff]
      %v298 = vld [vmem:[%s281 + $0x80] sm:$0xff]
      %v299 = vld [vmem:[%s281 + $0x88] sm:$0xff]
      %v300 = vld [vmem:[%s281 + $0x90] sm:$0xff]
      %v301 = vld [vmem:[%s281 + $0x98] sm:$0xff]
      %v302 = vld [vmem:[%s281 + $0xa0] sm:$0xff]
      %v303 = vld [vmem:[%s281 + $0xa8] sm:$0xff]
      %v304 = vld [vmem:[%s281 + $0xb0] sm:$0xff]
      %v305 = vld [vmem:[%s281 + $0xb8] sm:$0xff]
      %v306 = vld [vmem:[%s281 + $0xc0] sm:$0xff]
      %v307 = vld [vmem:[%s281 + $0xc8] sm:$0xff]
      %v308 = vld [vmem:[%s281 + $0xd0] sm:$0xff]
      %v309 = vld [vmem:[%s281 + $0xd8] sm:$0xff]
      %v310 = vld [vmem:[%s281 + $0xe0] sm:$0xff]
      %v311 = vld [vmem:[%s281 + $0xe8] sm:$0xff]
      %v312 = vld [vmem:[%s281 + $0xf0] sm:$0xff]
      %v313 = vld [vmem:[%s281 + $0xf8] sm:$0xff]
      %314 = vmatprep.subr.mxu0 0.0
      %315 = vmatpush1.msra.mxu0 %v282
      %316 = vmatprep.subr.mxu0 0.0
      %317 = vmatpush1.msra.mxu0 %v283
      %318 = vmatprep.subr.mxu0 0.0
      %319 = vmatpush1.msra.mxu0 %v284
      %320 = vmatprep.subr.mxu0 0.0
      %321 = vmatpush1.msra.mxu0 %v285
      %322 = vmatprep.subr.mxu0 0.0
      %323 = vmatpush1.msra.mxu0 %v286
      %324 = vmatprep.subr.mxu0 0.0
      %325 = vmatpush1.msra.mxu0 %v287
      %326 = vmatprep.subr.mxu0 0.0
      %327 = vmatpush1.msra.mxu0 %v288
      %328 = vmatprep.subr.mxu0 0.0
      %329 = vmatpush1.msra.mxu0 %v289
      %330 = vmatprep.subr.mxu0 0.0
      %331 = vmatpush1.msra.mxu0 %v290
      %332 = vmatprep.subr.mxu0 0.0
      %333 = vmatpush1.msra.mxu0 %v291
      %334 = vmatprep.subr.mxu0 0.0
      %335 = vmatpush1.msra.mxu0 %v292
      %336 = vmatprep.subr.mxu0 0.0
      %337 = vmatpush1.msra.mxu0 %v293
      %338 = vmatprep.subr.mxu0 0.0
      %339 = vmatpush1.msra.mxu0 %v294
      %340 = vmatprep.subr.mxu0 0.0
      %341 = vmatpush1.msra.mxu0 %v295
      %342 = vmatprep.subr.mxu0 0.0
      %343 = vmatpush1.msra.mxu0 %v296
      %344 = vmatprep.subr.mxu0 0.0
      %345 = vmatpush1.msra.mxu0 %v297
      %346 = vmatprep.subr.mxu0 0.0
      %347 = vmatpush1.msra.mxu0 %v298
      %348 = vmatprep.subr.mxu0 0.0
      %349 = vmatpush1.msra.mxu0 %v299
      %350 = vmatprep.subr.mxu0 0.0
      %351 = vmatpush1.msra.mxu0 %v300
      %352 = vmatprep.subr.mxu0 0.0
      %353 = vmatpush1.msra.mxu0 %v301
      %354 = vmatprep.subr.mxu0 0.0
      %355 = vmatpush1.msra.mxu0 %v302
      %356 = vmatprep.subr.mxu0 0.0
      %357 = vmatpush1.msra.mxu0 %v303
      %358 = vmatprep.subr.mxu0 0.0
      %359 = vmatpush1.msra.mxu0 %v304
      %360 = vmatprep.subr.mxu0 0.0
      %361 = vmatpush1.msra.mxu0 %v305
      %362 = vmatprep.subr.mxu0 0.0
      %363 = vmatpush1.msra.mxu0 %v306
      %364 = vmatprep.subr.mxu0 0.0
      %365 = vmatpush1.msra.mxu0 %v307
      %366 = vmatprep.subr.mxu0 0.0
      %367 = vmatpush1.msra.mxu0 %v308
      %368 = vmatprep.subr.mxu0 0.0
      %369 = vmatpush1.msra.mxu0 %v309
      %370 = vmatprep.subr.mxu0 0.0
      %371 = vmatpush1.msra.mxu0 %v310
      %372 = vmatprep.subr.mxu0 0.0
      %373 = vmatpush1.msra.mxu0 %v311
      %374 = vmatprep.subr.mxu0 0.0
      %375 = vmatpush1.msra.mxu0 %v312
      %376 = vmatprep.subr.mxu0 0.0
      %377 = vmatpush1.msra.mxu0 %v313
      %378 = vmatprep.mubr.f32.mxu0 %v170
      %379 = vmatmul.mubr.f32.gmra.mrb[0].mxu0 %v169
      %v380 = vpop.f32.mrb[0].mxu0
      %v381 = vadd.f32 0.0, %v380
      %v382 = vpop.f32.mrb[0].mxu0
      %383 = vdwg.mxu0
      %s384 = scalar_lea.vmem %s2, 8
      %v385 = vld [vmem:[%s384] sm:$0xff]
      %387 = vset.pattern.permute.xlu0 0
      %388 = vperm.xlu0 %387, %v385
      %v389 = vpop.permute.xlu0 %388
      %v391 = vmul.f32 %v381, %v389
      %v392 = vadd.f32 %v280, %v391
      %s393 = scalar_lea.vmem %s1, 512
      %v394 = vld [vmem:[%s393] sm:$0xff]
      %v395 = vld [vmem:[%s393 + $0x8] sm:$0xff]
      %v396 = vld [vmem:[%s393 + $0x10] sm:$0xff]
      %v397 = vld [vmem:[%s393 + $0x18] sm:$0xff]
      %v398 = vld [vmem:[%s393 + $0x20] sm:$0xff]
      %v399 = vld [vmem:[%s393 + $0x28] sm:$0xff]
      %v400 = vld [vmem:[%s393 + $0x30] sm:$0xff]
      %v401 = vld [vmem:[%s393 + $0x38] sm:$0xff]
      %v402 = vld [vmem:[%s393 + $0x40] sm:$0xff]
      %v403 = vld [vmem:[%s393 + $0x48] sm:$0xff]
      %v404 = vld [vmem:[%s393 + $0x50] sm:$0xff]
      %v405 = vld [vmem:[%s393 + $0x58] sm:$0xff]
      %v406 = vld [vmem:[%s393 + $0x60] sm:$0xff]
      %v407 = vld [vmem:[%s393 + $0x68] sm:$0xff]
      %v408 = vld [vmem:[%s393 + $0x70] sm:$0xff]
      %v409 = vld [vmem:[%s393 + $0x78] sm:$0xff]
      %v410 = vld [vmem:[%s393 + $0x80] sm:$0xff]
      %v411 = vld [vmem:[%s393 + $0x88] sm:$0xff]
      %v412 = vld [vmem:[%s393 + $0x90] sm:$0xff]
      %v413 = vld [vmem:[%s393 + $0x98] sm:$0xff]
      %v414 = vld [vmem:[%s393 + $0xa0] sm:$0xff]
      %v415 = vld [vmem:[%s393 + $0xa8] sm:$0xff]
      %v416 = vld [vmem:[%s393 + $0xb0] sm:$0xff]
      %v417 = vld [vmem:[%s393 + $0xb8] sm:$0xff]
      %v418 = vld [vmem:[%s393 + $0xc0] sm:$0xff]
      %v419 = vld [vmem:[%s393 + $0xc8] sm:$0xff]
      %v420 = vld [vmem:[%s393 + $0xd0] sm:$0xff]
      %v421 = vld [vmem:[%s393 + $0xd8] sm:$0xff]
      %v422 = vld [vmem:[%s393 + $0xe0] sm:$0xff]
      %v423 = vld [vmem:[%s393 + $0xe8] sm:$0xff]
      %v424 = vld [vmem:[%s393 + $0xf0] sm:$0xff]
      %v425 = vld [vmem:[%s393 + $0xf8] sm:$0xff]
      %426 = vmatprep.subr.mxu0 0.0
      %427 = vmatpush1.msra.mxu0 %v394
      %428 = vmatprep.subr.mxu0 0.0
      %429 = vmatpush1.msra.mxu0 %v395
      %430 = vmatprep.subr.mxu0 0.0
      %431 = vmatpush1.msra.mxu0 %v396
      %432 = vmatprep.subr.mxu0 0.0
      %433 = vmatpush1.msra.mxu0 %v397
      %434 = vmatprep.subr.mxu0 0.0
      %435 = vmatpush1.msra.mxu0 %v398
      %436 = vmatprep.subr.mxu0 0.0
      %437 = vmatpush1.msra.mxu0 %v399
      %438 = vmatprep.subr.mxu0 0.0
      %439 = vmatpush1.msra.mxu0 %v400
      %440 = vmatprep.subr.mxu0 0.0
      %441 = vmatpush1.msra.mxu0 %v401
      %442 = vmatprep.subr.mxu0 0.0
      %443 = vmatpush1.msra.mxu0 %v402
      %444 = vmatprep.subr.mxu0 0.0
      %445 = vmatpush1.msra.mxu0 %v403
      %446 = vmatprep.subr.mxu0 0.0
      %447 = vmatpush1.msra.mxu0 %v404
      %448 = vmatprep.subr.mxu0 0.0
      %449 = vmatpush1.msra.mxu0 %v405
      %450 = vmatprep.subr.mxu0 0.0
      %451 = vmatpush1.msra.mxu0 %v406
      %452 = vmatprep.subr.mxu0 0.0
      %453 = vmatpush1.msra.mxu0 %v407
      %454 = vmatprep.subr.mxu0 0.0
      %455 = vmatpush1.msra.mxu0 %v408
      %456 = vmatprep.subr.mxu0 0.0
      %457 = vmatpush1.msra.mxu0 %v409
      %458 = vmatprep.subr.mxu0 0.0
      %459 = vmatpush1.msra.mxu0 %v410
      %460 = vmatprep.subr.mxu0 0.0
      %461 = vmatpush1.msra.mxu0 %v411
      %462 = vmatprep.subr.mxu0 0.0
      %463 = vmatpush1.msra.mxu0 %v412
      %464 = vmatprep.subr.mxu0 0.0
      %465 = vmatpush1.msra.mxu0 %v413
      %466 = vmatprep.subr.mxu0 0.0
      %467 = vmatpush1.msra.mxu0 %v414
      %468 = vmatprep.subr.mxu0 0.0
      %469 = vmatpush1.msra.mxu0 %v415
      %470 = vmatprep.subr.mxu0 0.0
      %471 = vmatpush1.msra.mxu0 %v416
      %472 = vmatprep.subr.mxu0 0.0
      %473 = vmatpush1.msra.mxu0 %v417
      %474 = vmatprep.subr.mxu0 0.0
      %475 = vmatpush1.msra.mxu0 %v418
      %476 = vmatprep.subr.mxu0 0.0
      %477 = vmatpush1.msra.mxu0 %v419
      %478 = vmatprep.subr.mxu0 0.0
      %479 = vmatpush1.msra.mxu0 %v420
      %480 = vmatprep.subr.mxu0 0.0
      %481 = vmatpush1.msra.mxu0 %v421
      %482 = vmatprep.subr.mxu0 0.0
      %483 = vmatpush1.msra.mxu0 %v422
      %484 = vmatprep.subr.mxu0 0.0
      %485 = vmatpush1.msra.mxu0 %v423
      %486 = vmatprep.subr.mxu0 0.0
      %487 = vmatpush1.msra.mxu0 %v424
      %488 = vmatprep.subr.mxu0 0.0
      %489 = vmatpush1.msra.mxu0 %v425
      %490 = vmatprep.mubr.f32.mxu0 %v170
      %491 = vmatmul.mubr.f32.gmra.mrb[0].mxu0 %v169
      %v492 = vpop.f32.mrb[0].mxu0
      %v493 = vadd.f32 0.0, %v492
      %v494 = vpop.f32.mrb[0].mxu0
      %495 = vdwg.mxu0
      %s496 = scalar_lea.vmem %s2, 16
      %v497 = vld [vmem:[%s496] sm:$0xff]
      %499 = vset.pattern.permute.xlu0 0
      %500 = vperm.xlu0 %499, %v497
      %v501 = vpop.permute.xlu0 %500
      %v503 = vmul.f32 %v493, %v501
      %v504 = vadd.f32 %v392, %v503
      %s505 = scalar_lea.vmem %s1, 768
      %v506 = vld [vmem:[%s505] sm:$0xff]
      %v507 = vld [vmem:[%s505 + $0x8] sm:$0xff]
      %v508 = vld [vmem:[%s505 + $0x10] sm:$0xff]
      %v509 = vld [vmem:[%s505 + $0x18] sm:$0xff]
      %v510 = vld [vmem:[%s505 + $0x20] sm:$0xff]
      %v511 = vld [vmem:[%s505 + $0x28] sm:$0xff]
      %v512 = vld [vmem:[%s505 + $0x30] sm:$0xff]
      %v513 = vld [vmem:[%s505 + $0x38] sm:$0xff]
      %v514 = vld [vmem:[%s505 + $0x40] sm:$0xff]
      %v515 = vld [vmem:[%s505 + $0x48] sm:$0xff]
      %v516 = vld [vmem:[%s505 + $0x50] sm:$0xff]
      %v517 = vld [vmem:[%s505 + $0x58] sm:$0xff]
      %v518 = vld [vmem:[%s505 + $0x60] sm:$0xff]
      %v519 = vld [vmem:[%s505 + $0x68] sm:$0xff]
      %v520 = vld [vmem:[%s505 + $0x70] sm:$0xff]
      %v521 = vld [vmem:[%s505 + $0x78] sm:$0xff]
      %v522 = vld [vmem:[%s505 + $0x80] sm:$0xff]
      %v523 = vld [vmem:[%s505 + $0x88] sm:$0xff]
      %v524 = vld [vmem:[%s505 + $0x90] sm:$0xff]
      %v525 = vld [vmem:[%s505 + $0x98] sm:$0xff]
      %v526 = vld [vmem:[%s505 + $0xa0] sm:$0xff]
      %v527 = vld [vmem:[%s505 + $0xa8] sm:$0xff]
      %v528 = vld [vmem:[%s505 + $0xb0] sm:$0xff]
      %v529 = vld [vmem:[%s505 + $0xb8] sm:$0xff]
      %v530 = vld [vmem:[%s505 + $0xc0] sm:$0xff]
      %v531 = vld [vmem:[%s505 + $0xc8] sm:$0xff]
      %v532 = vld [vmem:[%s505 + $0xd0] sm:$0xff]
      %v533 = vld [vmem:[%s505 + $0xd8] sm:$0xff]
      %v534 = vld [vmem:[%s505 + $0xe0] sm:$0xff]
      %v535 = vld [vmem:[%s505 + $0xe8] sm:$0xff]
      %v536 = vld [vmem:[%s505 + $0xf0] sm:$0xff]
      %v537 = vld [vmem:[%s505 + $0xf8] sm:$0xff]
      %538 = vmatprep.subr.mxu0 0.0
      %539 = vmatpush1.msra.mxu0 %v506
      %540 = vmatprep.subr.mxu0 0.0
      %541 = vmatpush1.msra.mxu0 %v507
      %542 = vmatprep.subr.mxu0 0.0
      %543 = vmatpush1.msra.mxu0 %v508
      %544 = vmatprep.subr.mxu0 0.0
      %545 = vmatpush1.msra.mxu0 %v509
      %546 = vmatprep.subr.mxu0 0.0
      %547 = vmatpush1.msra.mxu0 %v510
      %548 = vmatprep.subr.mxu0 0.0
      %549 = vmatpush1.msra.mxu0 %v511
      %550 = vmatprep.subr.mxu0 0.0
      %551 = vmatpush1.msra.mxu0 %v512
      %552 = vmatprep.subr.mxu0 0.0
      %553 = vmatpush1.msra.mxu0 %v513
      %554 = vmatprep.subr.mxu0 0.0
      %555 = vmatpush1.msra.mxu0 %v514
      %556 = vmatprep.subr.mxu0 0.0
      %557 = vmatpush1.msra.mxu0 %v515
      %558 = vmatprep.subr.mxu0 0.0
      %559 = vmatpush1.msra.mxu0 %v516
      %560 = vmatprep.subr.mxu0 0.0
      %561 = vmatpush1.msra.mxu0 %v517
      %562 = vmatprep.subr.mxu0 0.0
      %563 = vmatpush1.msra.mxu0 %v518
      %564 = vmatprep.subr.mxu0 0.0
      %565 = vmatpush1.msra.mxu0 %v519
      %566 = vmatprep.subr.mxu0 0.0
      %567 = vmatpush1.msra.mxu0 %v520
      %568 = vmatprep.subr.mxu0 0.0
      %569 = vmatpush1.msra.mxu0 %v521
      %570 = vmatprep.subr.mxu0 0.0
      %571 = vmatpush1.msra.mxu0 %v522
      %572 = vmatprep.subr.mxu0 0.0
      %573 = vmatpush1.msra.mxu0 %v523
      %574 = vmatprep.subr.mxu0 0.0
      %575 = vmatpush1.msra.mxu0 %v524
      %576 = vmatprep.subr.mxu0 0.0
      %577 = vmatpush1.msra.mxu0 %v525
      %578 = vmatprep.subr.mxu0 0.0
      %579 = vmatpush1.msra.mxu0 %v526
      %580 = vmatprep.subr.mxu0 0.0
      %581 = vmatpush1.msra.mxu0 %v527
      %582 = vmatprep.subr.mxu0 0.0
      %583 = vmatpush1.msra.mxu0 %v528
      %584 = vmatprep.subr.mxu0 0.0
      %585 = vmatpush1.msra.mxu0 %v529
      %586 = vmatprep.subr.mxu0 0.0
      %587 = vmatpush1.msra.mxu0 %v530
      %588 = vmatprep.subr.mxu0 0.0
      %589 = vmatpush1.msra.mxu0 %v531
      %590 = vmatprep.subr.mxu0 0.0
      %591 = vmatpush1.msra.mxu0 %v532
      %592 = vmatprep.subr.mxu0 0.0
      %593 = vmatpush1.msra.mxu0 %v533
      %594 = vmatprep.subr.mxu0 0.0
      %595 = vmatpush1.msra.mxu0 %v534
      %596 = vmatprep.subr.mxu0 0.0
      %597 = vmatpush1.msra.mxu0 %v535
      %598 = vmatprep.subr.mxu0 0.0
      %599 = vmatpush1.msra.mxu0 %v536
      %600 = vmatprep.subr.mxu0 0.0
      %601 = vmatpush1.msra.mxu0 %v537
      %602 = vmatprep.mubr.f32.mxu0 %v170
      %603 = vmatmul.mubr.f32.gmra.mrb[0].mxu0 %v169
      %v604 = vpop.f32.mrb[0].mxu0
      %v605 = vadd.f32 0.0, %v604
      %v606 = vpop.f32.mrb[0].mxu0
      %607 = vdwg.mxu0
      %s608 = scalar_lea.vmem %s2, 24
      %v609 = vld [vmem:[%s608] sm:$0xff]
      %611 = vset.pattern.permute.xlu0 0
      %612 = vperm.xlu0 %611, %v609
      %v613 = vpop.permute.xlu0 %612
      %v615 = vmul.f32 %v605, %v613
      %v616 = vadd.f32 %v504, %v615
      %vm617 = vcmask 130048
      %618 = vst.msk [vmem:[%s168] sm:$0xff] %vm617, %v616
      %p619 = scmp.lt.s32.totalorder %s14, 3
      %s620 = scalar_select %p619, %s14, 3
      %s621 = smul.addr %s620, 8
      %s622 = scalar_lea.vmem %s3, %s621
      // Predicated region
      $region33: #{tpu_custom_call.1} parent=31 // pred_check
        %p623 = pneg %p100
      $region34: #{tpu_custom_call.1} parent=31 // pred_check_branch
        %625 = sbr.rel (%p623) target = $region36
      $region35: #{tpu_custom_call.1} parent=31 // pred_region
        _
      $region36: #{tpu_custom_call.1} parent=31 // pred_fallthru
        _
    $region32: #{tpu_custom_call.1} parent=5 // pred_fallthru
      _
    %p626 = scmp.le.s32.totalorder 2, %s9
    // Predicated region
    $region37: #{tpu_custom_call.1} parent=5 // pred_check
      %p627 = pneg %p626
    $region38: #{tpu_custom_call.1} parent=5 // pred_check_branch
      %629 = sbr.rel (%p627) target = $region40
    $region39: #{tpu_custom_call.1} parent=5 // pred_region
      %s630 = ssub.s32 %s9, 2
      // Predicated region
      $region41: #{tpu_custom_call.1} parent=39 // pred_check
        %p631 = pneg %p106
      $region42: #{tpu_custom_call.1} parent=39 // pred_check_branch
        %633 = sbr.rel (%p631) target = $region44
      $region43: #{tpu_custom_call.1} parent=39 // pred_region
        %p634 = scmp.lt.s32.totalorder %s15, 3
        %s635 = scalar_select %p634, %s15, 3
        %s636 = smul.addr %s635, 8
        %s637 = scalar_lea.vmem %s3, %s636
      $region44: #{tpu_custom_call.1} parent=39 // pred_fallthru
        _
    $region40: #{tpu_custom_call.1} parent=5 // pred_fallthru
      _
  $region6: #{tpu_custom_call.1} parent=0 // loop_footer
    %s13 = sadd.s32 1, %s9
  $region7: #{tpu_custom_call.1} parent=0 // loop_footer_branch
    %8 = sbr.rel target = $region3
  $region8: #{tpu_custom_call.1} parent=0 // loop_exit
    _

</llo_original>
